<compile_context>
chip_gen: v7x
topology: tpu7x:2x2x1
jax: 0.10.0
libtpu: 0.0.40
codegen_flags: <defaults>
</compile_context>

<pallas_src>
import jax
import jax.numpy as jnp
from jax.experimental import pallas as pl
from jax.experimental.pallas import tpu as pltpu

IGNORE_INDEX = 255
THRESH = 0.7
MIN_KEPT = 256

_INVALID_PROB = 2.0      # sentinel gt-prob for ignored/padded pixels (> any softmax prob)
_KEEP_ALL_THRESH = 1.5   # threshold used when OHEM filtering is inactive


# ----------------------------------------------------------------------------
# Kernel 1: per-pixel softmax cross-entropy + ground-truth probability
#   logits_ref: (1, C, Rt, 128)   target_ref: (1, Rt, 128) int32
#   loss_ref:   (1, Rt, 128) f32  (0 for ignored pixels)
#   prob_ref:   (1, Rt, 128) f32  (sentinel 2.0 for ignored pixels)
# ----------------------------------------------------------------------------
def _ce_kernel(logits_ref, target_ref, loss_ref, prob_ref):
    c = logits_ref.shape[1]
    tgt = target_ref[0]                                   # (Rt, 128)
    valid = tgt != IGNORE_INDEX
    tgt_c = jnp.where(valid, tgt, 0)

    # running max over the class axis: C-1 dense (Rt,128) VPU maxes
    m = logits_ref[0, 0].astype(jnp.float32)
    for ci in range(1, c):
        m = jnp.maximum(m, logits_ref[0, ci].astype(jnp.float32))

    sumexp = jnp.zeros_like(m)
    gt_z = jnp.zeros_like(m)
    gt_e = jnp.zeros_like(m)
    for ci in range(c):                                   # unrolled class loop
        z_c = logits_ref[0, ci].astype(jnp.float32) - m
        e_c = jnp.exp(z_c)
        sumexp = sumexp + e_c
        sel = tgt_c == ci
        gt_z = jnp.where(sel, z_c, gt_z)
        gt_e = jnp.where(sel, e_c, gt_e)

    loss = jnp.log(sumexp) - gt_z                          # -log_softmax[gt]
    prob_gt = gt_e / sumexp                                # softmax[gt] (no 2nd exp)

    loss_ref[0] = jnp.where(valid, loss, 0.0)
    prob_ref[0] = jnp.where(valid, prob_gt, _INVALID_PROB)


# ----------------------------------------------------------------------------
# Kernel 2: OHEM kept-mask + masked sum / count with per-group vector
#           accumulators (groups x (8,128) partials, finished in JAX)
# ----------------------------------------------------------------------------
def _reduce_kernel(thr_ref, loss_ref, prob_ref, sum_ref, cnt_ref):
    @pl.when(pl.program_id(1) == 0)
    def _():
        sum_ref[...] = jnp.zeros_like(sum_ref)
        cnt_ref[...] = jnp.zeros_like(cnt_ref)

    threshold = thr_ref[0]                                   # dynamic threshold (SMEM)
    kept = (prob_ref[...] <= threshold).astype(jnp.float32)  # excludes sentinel 2.0
    masked = loss_ref[...] * kept                            # (tr, 128)
    tr = masked.shape[0]
    # leading-axis sums = pure VPU adds into a dense (8,128) accumulator
    sum_ref[...] += jnp.sum(masked.reshape(tr // 8, 8, 128), axis=0)
    cnt_ref[...] += jnp.sum(kept.reshape(tr // 8, 8, 128), axis=0)


# ----------------------------------------------------------------------------
# Helpers
# ----------------------------------------------------------------------------
def _round_up(x, m):
    return ((x + m - 1) // m) * m


def _largest_aligned_divisor(total, cap, align):
    """Largest t <= cap with t % align == 0 and total % t == 0.
    `total` is guaranteed (by construction) to be a multiple of `align`;
    returns `total` itself when total <= cap."""
    if total <= cap:
        return total
    t = (cap // align) * align
    while t > align:
        if total % t == 0:
            return t
        t -= align
    return align


def _vmem_budget():
    """Per-generation (logits-tile f32-byte cap, vmem_limit_bytes)."""
    try:
        vmem_cap = int(pltpu.get_tpu_info().vmem_capacity_bytes)
    except Exception:
        vmem_cap = 64 * 1024 * 1024                 # conservative (v7x-like)
    if vmem_cap >= 100 * 1024 * 1024:               # v5e / v6e: 128 MiB physical
        return 8 * 1024 * 1024, 96 * 1024 * 1024
    return 3 * 1024 * 1024, 48 * 1024 * 1024        # v7x: 64 MiB physical


# ----------------------------------------------------------------------------
# Wrapper
# ----------------------------------------------------------------------------
def ohem_cross_entropy_2d(pred, target, *, thresh=THRESH, min_kept=MIN_KEPT):
    b, c, h, w = pred.shape
    npix0 = h * w
    n_orig = b * npix0

    groups = 2                      # always 2-way reduce split (2 TCs on v7x)

    # Pixel axis -> (rows, 128) slabs.  Pad rows per batch to a multiple of 16
    # so kernel-1 row tiles are multiples of 8 and b*R splits evenly in 2 groups
    # of rows that are themselves multiples of 8.
    r0 = pl.cdiv(npix0, 128)
    r = _round_up(max(r0, 1), 16)
    npix = r * 128

    logits = pred.reshape(b, c, npix0)                      # free reshape (no transpose)
    tgt = target.reshape(b, npix0).astype(jnp.int32)
    if npix != npix0:
        padn = npix - npix0
        logits = jnp.pad(logits, ((0, 0), (0, 0), (0, padn)))
        tgt = jnp.pad(tgt, ((0, 0), (0, padn)), constant_values=IGNORE_INDEX)
    logits = logits.reshape(b, c, r, 128)                   # class axis leading
    tgt = tgt.reshape(b, r, 128)

    tile_cap_bytes, vmem_limit = _vmem_budget()

    # ---- kernel 1: per-pixel CE + gt-probability ---------------------------
    row_f32_bytes = c * 128 * 4
    rt_cap = max(8, min(2048, (tile_cap_bytes // row_f32_bytes) // 8 * 8))
    rt = _largest_aligned_divisor(r, rt_cap, 8)

    loss, prob = pl.pallas_call(
        _ce_kernel,
        out_shape=(
            jax.ShapeDtypeStruct((b, r, 128), jnp.float32),
            jax.ShapeDtypeStruct((b, r, 128), jnp.float32),
        ),
        grid=(b, r // rt),
        in_specs=[
            pl.BlockSpec((1, c, rt, 128), lambda bi, ri: (bi, 0, ri, 0)),
            pl.BlockSpec((1, rt, 128), lambda bi, ri: (bi, ri, 0)),
        ],
        out_specs=(
            pl.BlockSpec((1, rt, 128), lambda bi, ri: (bi, ri, 0)),
            pl.BlockSpec((1, rt, 128), lambda bi, ri: (bi, ri, 0)),
        ),
        compiler_params=pltpu.CompilerParams(
            dimension_semantics=("parallel", "parallel"),
            vmem_limit_bytes=vmem_limit,
        ),
    )(logits, tgt)

    # ---- OHEM threshold selection (fast path avoids the sort) ---------------
    num_valid = jnp.sum(tgt != IGNORE_INDEX)       # padded pixels are 255 -> excluded
    if min_kept > 0:
        k = min(n_orig, int(min_kept))
        # #(valid probs <= static thresh); sentinel 2.0 excludes ignored/padded.
        count_le = jnp.sum(prob <= jnp.float32(thresh))

        def _slow_path():
            # TODO(synk): k-th-smallest selection has no clean Pallas primitive;
            # fall back to lax.top_k (only runs when < min_kept probs are <= thresh).
            pool = jnp.minimum(prob.reshape(-1), 1.0)   # PyTorch fills ignored w/ 1.0
            kth = -jax.lax.top_k(-pool, k)[0][k - 1]
            return jnp.maximum(kth, jnp.float32(thresh))

        thr_ohem = jax.lax.cond(count_le >= k,
                                lambda: jnp.float32(thresh),
                                _slow_path)
        apply_ohem = jnp.logical_and(num_valid >= min_kept, num_valid > 0)
        threshold = jnp.where(apply_ohem, thr_ohem, jnp.float32(_KEEP_ALL_THRESH))
    else:
        threshold = jnp.where(num_valid > 0, jnp.float32(thresh),
                              jnp.float32(_KEEP_ALL_THRESH))
    threshold = threshold.reshape(1).astype(jnp.float32)

    # ---- kernel 2: kept-mask + masked mean reduction -------------------------
    rows = b * r
    loss2 = loss.reshape(rows, 128)                 # free reshape (already lane-dense)
    prob2 = prob.reshape(rows, 128)
    rows_pg = rows // groups                        # multiple of 8 by construction
    tr = _largest_aligned_divisor(rows_pg, 1024, 8)
    inner = rows_pg // tr

    sums, cnts = pl.pallas_call(
        _reduce_kernel,
        out_shape=(
            jax.ShapeDtypeStruct((groups * 8, 128), jnp.float32),
            jax.ShapeDtypeStruct((groups * 8, 128), jnp.float32),
        ),
        grid=(groups, inner),
        in_specs=[
            pl.BlockSpec(memory_space=pltpu.MemorySpace.SMEM),     # threshold (1,)
            pl.BlockSpec((tr, 128), lambda g, i: (g * inner + i, 0)),
            pl.BlockSpec((tr, 128), lambda g, i: (g * inner + i, 0)),
        ],
        out_specs=(
            pl.BlockSpec((8, 128), lambda g, i: (g, 0)),
            pl.BlockSpec((8, 128), lambda g, i: (g, 0)),
        ),
        compiler_params=pltpu.CompilerParams(
            dimension_semantics=("parallel", "arbitrary"),
            vmem_limit_bytes=vmem_limit,
        ),
    )(threshold, loss2, prob2)

    # mean over kept (valid & selected) pixels, like CrossEntropyLoss('mean')
    return jnp.sum(sums) / jnp.sum(cnts)


# ----------------------------------------------------------------------------
# Pure-JAX reference for verification
# ----------------------------------------------------------------------------
def _reference(pred, target, *, thresh=THRESH, min_kept=MIN_KEPT):
    b, c, h, w = pred.shape
    n = b * h * w
    logits = jnp.transpose(pred, (0, 2, 3, 1)).reshape(n, c).astype(jnp.float32)
    tgt = target.reshape(n).astype(jnp.int32)
    valid = tgt != IGNORE_INDEX
    tgt_c = jnp.where(valid, tgt, 0)
    logp = jax.nn.log_softmax(logits, axis=-1)
    gt_logp = jnp.take_along_axis(logp, tgt_c[:, None], axis=-1)[:, 0]
    prob = jnp.where(valid, jnp.exp(gt_logp), 1.0)
    num_valid = jnp.sum(valid)
    k = min(n, int(min_kept))
    kth = jnp.sort(prob)[k - 1]
    threshold = jnp.where(kth > thresh, kth, jnp.float32(thresh))
    apply_ohem = jnp.logical_and(min_kept > 0,
                                 jnp.logical_and(num_valid >= min_kept,
                                                 num_valid > 0))
    kept = jnp.where(apply_ohem, prob <= threshold, True)
    final = (valid & kept).astype(jnp.float32)
    return jnp.sum(-gt_logp * final) / jnp.sum(final)


if __name__ == "__main__":
    key = jax.random.PRNGKey(0)
    k1, k2, k3 = jax.random.split(key, 3)

    B, C, H, W = 2, 8, 16, 16          # N = 512 pixels, min_kept=256 <= num_valid
    pred = jax.random.normal(k1, (B, C, H, W), dtype=jnp.float32)
    target = jax.random.randint(k2, (B, H, W), 0, C, dtype=jnp.int32)
    # sprinkle some ignore_index pixels
    ignore = jax.random.uniform(k3, (B, H, W)) < 0.1
    target = jnp.where(ignore, IGNORE_INDEX, target)

    out = jax.block_until_ready(ohem_cross_entropy_2d(pred, target))
    ref = jax.block_until_ready(_reference(pred, target))

    assert jnp.isfinite(out), "non-finite loss"
    assert jnp.allclose(out, ref, rtol=1e-4, atol=1e-4), (out, ref)

    print("KERNEL_OK")
</pallas_src>

<mosaic_0001>
module attributes {stable_mosaic.version = 11 : i64} {
  func.func @_ce_kernel(%arg0: i32, %arg1: i32, %arg2: memref<1x8x16x128xf32, #tpu.memory_space<vmem>>, %arg3: memref<1x16x128xi32, #tpu.memory_space<vmem>>, %arg4: memref<1x16x128xf32, #tpu.memory_space<vmem>>, %arg5: memref<1x16x128xf32, #tpu.memory_space<vmem>>) attributes {dimension_semantics = [#tpu.dimension_semantics<parallel>, #tpu.dimension_semantics<parallel>], iteration_bounds = array<i64: 2, 1>, scalar_prefetch = 0 : i64, scratch_operands = 0 : i64, tpu.core_type = #tpu.core_type<tc>, window_params = [{transform_indices = @transform_0, window_bounds = array<i64: 1, 8, 16, 128>}, {transform_indices = @transform_1, window_bounds = array<i64: 1, 16, 128>}, {transform_indices = @transform_2, window_bounds = array<i64: 1, 16, 128>}, {transform_indices = @transform_3, window_bounds = array<i64: 1, 16, 128>}]} {
    %c0 = arith.constant 0 : index
    %c0_0 = arith.constant 0 : index
    %c0_1 = arith.constant 0 : index
    %0 = vector.load %arg3[%c0, %c0_0, %c0_1] : memref<1x16x128xi32, #tpu.memory_space<vmem>>, vector<1x16x128xi32>
    %1 = vector.shape_cast %0 : vector<1x16x128xi32> to vector<16x128xi32>
    %c255_i32 = arith.constant 255 : i32
    %2 = vector.broadcast %c255_i32 : i32 to vector<16x128xi32>
    %3 = arith.cmpi ne, %1, %2 : vector<16x128xi32>
    %c0_i32 = arith.constant 0 : i32
    %4 = vector.broadcast %c0_i32 : i32 to vector<16x128xi32>
    %5 = arith.select %3, %1, %4 : vector<16x128xi1>, vector<16x128xi32>
    %c0_2 = arith.constant 0 : index
    %c0_3 = arith.constant 0 : index
    %c0_4 = arith.constant 0 : index
    %c0_5 = arith.constant 0 : index
    %6 = vector.load %arg2[%c0_2, %c0_3, %c0_4, %c0_5] : memref<1x8x16x128xf32, #tpu.memory_space<vmem>>, vector<1x1x16x128xf32>
    %7 = vector.shape_cast %6 : vector<1x1x16x128xf32> to vector<16x128xf32>
    %c0_6 = arith.constant 0 : index
    %c1 = arith.constant 1 : index
    %c0_7 = arith.constant 0 : index
    %c0_8 = arith.constant 0 : index
    %8 = vector.load %arg2[%c0_6, %c1, %c0_7, %c0_8] : memref<1x8x16x128xf32, #tpu.memory_space<vmem>>, vector<1x1x16x128xf32>
    %9 = vector.shape_cast %8 : vector<1x1x16x128xf32> to vector<16x128xf32>
    %10 = arith.maximumf %7, %9 : vector<16x128xf32>
    %c0_9 = arith.constant 0 : index
    %c2 = arith.constant 2 : index
    %c0_10 = arith.constant 0 : index
    %c0_11 = arith.constant 0 : index
    %11 = vector.load %arg2[%c0_9, %c2, %c0_10, %c0_11] : memref<1x8x16x128xf32, #tpu.memory_space<vmem>>, vector<1x1x16x128xf32>
    %12 = vector.shape_cast %11 : vector<1x1x16x128xf32> to vector<16x128xf32>
    %13 = arith.maximumf %10, %12 : vector<16x128xf32>
    %c0_12 = arith.constant 0 : index
    %c3 = arith.constant 3 : index
    %c0_13 = arith.constant 0 : index
    %c0_14 = arith.constant 0 : index
    %14 = vector.load %arg2[%c0_12, %c3, %c0_13, %c0_14] : memref<1x8x16x128xf32, #tpu.memory_space<vmem>>, vector<1x1x16x128xf32>
    %15 = vector.shape_cast %14 : vector<1x1x16x128xf32> to vector<16x128xf32>
    %16 = arith.maximumf %13, %15 : vector<16x128xf32>
    %c0_15 = arith.constant 0 : index
    %c4 = arith.constant 4 : index
    %c0_16 = arith.constant 0 : index
    %c0_17 = arith.constant 0 : index
    %17 = vector.load %arg2[%c0_15, %c4, %c0_16, %c0_17] : memref<1x8x16x128xf32, #tpu.memory_space<vmem>>, vector<1x1x16x128xf32>
    %18 = vector.shape_cast %17 : vector<1x1x16x128xf32> to vector<16x128xf32>
    %19 = arith.maximumf %16, %18 : vector<16x128xf32>
    %c0_18 = arith.constant 0 : index
    %c5 = arith.constant 5 : index
    %c0_19 = arith.constant 0 : index
    %c0_20 = arith.constant 0 : index
    %20 = vector.load %arg2[%c0_18, %c5, %c0_19, %c0_20] : memref<1x8x16x128xf32, #tpu.memory_space<vmem>>, vector<1x1x16x128xf32>
    %21 = vector.shape_cast %20 : vector<1x1x16x128xf32> to vector<16x128xf32>
    %22 = arith.maximumf %19, %21 : vector<16x128xf32>
    %c0_21 = arith.constant 0 : index
    %c6 = arith.constant 6 : index
    %c0_22 = arith.constant 0 : index
    %c0_23 = arith.constant 0 : index
    %23 = vector.load %arg2[%c0_21, %c6, %c0_22, %c0_23] : memref<1x8x16x128xf32, #tpu.memory_space<vmem>>, vector<1x1x16x128xf32>
    %24 = vector.shape_cast %23 : vector<1x1x16x128xf32> to vector<16x128xf32>
    %25 = arith.maximumf %22, %24 : vector<16x128xf32>
    %c0_24 = arith.constant 0 : index
    %c7 = arith.constant 7 : index
    %c0_25 = arith.constant 0 : index
    %c0_26 = arith.constant 0 : index
    %26 = vector.load %arg2[%c0_24, %c7, %c0_25, %c0_26] : memref<1x8x16x128xf32, #tpu.memory_space<vmem>>, vector<1x1x16x128xf32>
    %27 = vector.shape_cast %26 : vector<1x1x16x128xf32> to vector<16x128xf32>
    %28 = arith.maximumf %25, %27 : vector<16x128xf32>
    %cst = arith.constant 0.000000e+00 : f32
    %29 = vector.broadcast %cst : f32 to vector<16x128xf32>
    %cst_27 = arith.constant 0.000000e+00 : f32
    %30 = vector.broadcast %cst_27 : f32 to vector<16x128xf32>
    %cst_28 = arith.constant 0.000000e+00 : f32
    %31 = vector.broadcast %cst_28 : f32 to vector<16x128xf32>
    %c0_29 = arith.constant 0 : index
    %c0_30 = arith.constant 0 : index
    %c0_31 = arith.constant 0 : index
    %c0_32 = arith.constant 0 : index
    %32 = vector.load %arg2[%c0_29, %c0_30, %c0_31, %c0_32] : memref<1x8x16x128xf32, #tpu.memory_space<vmem>>, vector<1x1x16x128xf32>
    %33 = vector.shape_cast %32 : vector<1x1x16x128xf32> to vector<16x128xf32>
    %34 = arith.subf %33, %28 : vector<16x128xf32>
    %35 = math.exp %34 : vector<16x128xf32>
    %36 = arith.addf %29, %35 : vector<16x128xf32>
    %c0_i32_33 = arith.constant 0 : i32
    %37 = vector.broadcast %c0_i32_33 : i32 to vector<16x128xi32>
    %38 = arith.cmpi eq, %5, %37 : vector<16x128xi32>
    %39 = arith.select %38, %34, %30 : vector<16x128xi1>, vector<16x128xf32>
    %40 = arith.select %38, %35, %31 : vector<16x128xi1>, vector<16x128xf32>
    %c0_34 = arith.constant 0 : index
    %c1_35 = arith.constant 1 : index
    %c0_36 = arith.constant 0 : index
    %c0_37 = arith.constant 0 : index
    %41 = vector.load %arg2[%c0_34, %c1_35, %c0_36, %c0_37] : memref<1x8x16x128xf32, #tpu.memory_space<vmem>>, vector<1x1x16x128xf32>
    %42 = vector.shape_cast %41 : vector<1x1x16x128xf32> to vector<16x128xf32>
    %43 = arith.subf %42, %28 : vector<16x128xf32>
    %44 = math.exp %43 : vector<16x128xf32>
    %45 = arith.addf %36, %44 : vector<16x128xf32>
    %c1_i32 = arith.constant 1 : i32
    %46 = vector.broadcast %c1_i32 : i32 to vector<16x128xi32>
    %47 = arith.cmpi eq, %5, %46 : vector<16x128xi32>
    %48 = arith.select %47, %43, %39 : vector<16x128xi1>, vector<16x128xf32>
    %49 = arith.select %47, %44, %40 : vector<16x128xi1>, vector<16x128xf32>
    %c0_38 = arith.constant 0 : index
    %c2_39 = arith.constant 2 : index
    %c0_40 = arith.constant 0 : index
    %c0_41 = arith.constant 0 : index
    %50 = vector.load %arg2[%c0_38, %c2_39, %c0_40, %c0_41] : memref<1x8x16x128xf32, #tpu.memory_space<vmem>>, vector<1x1x16x128xf32>
    %51 = vector.shape_cast %50 : vector<1x1x16x128xf32> to vector<16x128xf32>
    %52 = arith.subf %51, %28 : vector<16x128xf32>
    %53 = math.exp %52 : vector<16x128xf32>
    %54 = arith.addf %45, %53 : vector<16x128xf32>
    %c2_i32 = arith.constant 2 : i32
    %55 = vector.broadcast %c2_i32 : i32 to vector<16x128xi32>
    %56 = arith.cmpi eq, %5, %55 : vector<16x128xi32>
    %57 = arith.select %56, %52, %48 : vector<16x128xi1>, vector<16x128xf32>
    %58 = arith.select %56, %53, %49 : vector<16x128xi1>, vector<16x128xf32>
    %c0_42 = arith.constant 0 : index
    %c3_43 = arith.constant 3 : index
    %c0_44 = arith.constant 0 : index
    %c0_45 = arith.constant 0 : index
    %59 = vector.load %arg2[%c0_42, %c3_43, %c0_44, %c0_45] : memref<1x8x16x128xf32, #tpu.memory_space<vmem>>, vector<1x1x16x128xf32>
    %60 = vector.shape_cast %59 : vector<1x1x16x128xf32> to vector<16x128xf32>
    %61 = arith.subf %60, %28 : vector<16x128xf32>
    %62 = math.exp %61 : vector<16x128xf32>
    %63 = arith.addf %54, %62 : vector<16x128xf32>
    %c3_i32 = arith.constant 3 : i32
    %64 = vector.broadcast %c3_i32 : i32 to vector<16x128xi32>
    %65 = arith.cmpi eq, %5, %64 : vector<16x128xi32>
    %66 = arith.select %65, %61, %57 : vector<16x128xi1>, vector<16x128xf32>
    %67 = arith.select %65, %62, %58 : vector<16x128xi1>, vector<16x128xf32>
    %c0_46 = arith.constant 0 : index
    %c4_47 = arith.constant 4 : index
    %c0_48 = arith.constant 0 : index
    %c0_49 = arith.constant 0 : index
    %68 = vector.load %arg2[%c0_46, %c4_47, %c0_48, %c0_49] : memref<1x8x16x128xf32, #tpu.memory_space<vmem>>, vector<1x1x16x128xf32>
    %69 = vector.shape_cast %68 : vector<1x1x16x128xf32> to vector<16x128xf32>
    %70 = arith.subf %69, %28 : vector<16x128xf32>
    %71 = math.exp %70 : vector<16x128xf32>
    %72 = arith.addf %63, %71 : vector<16x128xf32>
    %c4_i32 = arith.constant 4 : i32
    %73 = vector.broadcast %c4_i32 : i32 to vector<16x128xi32>
    %74 = arith.cmpi eq, %5, %73 : vector<16x128xi32>
    %75 = arith.select %74, %70, %66 : vector<16x128xi1>, vector<16x128xf32>
    %76 = arith.select %74, %71, %67 : vector<16x128xi1>, vector<16x128xf32>
    %c0_50 = arith.constant 0 : index
    %c5_51 = arith.constant 5 : index
    %c0_52 = arith.constant 0 : index
    %c0_53 = arith.constant 0 : index
    %77 = vector.load %arg2[%c0_50, %c5_51, %c0_52, %c0_53] : memref<1x8x16x128xf32, #tpu.memory_space<vmem>>, vector<1x1x16x128xf32>
    %78 = vector.shape_cast %77 : vector<1x1x16x128xf32> to vector<16x128xf32>
    %79 = arith.subf %78, %28 : vector<16x128xf32>
    %80 = math.exp %79 : vector<16x128xf32>
    %81 = arith.addf %72, %80 : vector<16x128xf32>
    %c5_i32 = arith.constant 5 : i32
    %82 = vector.broadcast %c5_i32 : i32 to vector<16x128xi32>
    %83 = arith.cmpi eq, %5, %82 : vector<16x128xi32>
    %84 = arith.select %83, %79, %75 : vector<16x128xi1>, vector<16x128xf32>
    %85 = arith.select %83, %80, %76 : vector<16x128xi1>, vector<16x128xf32>
    %c0_54 = arith.constant 0 : index
    %c6_55 = arith.constant 6 : index
    %c0_56 = arith.constant 0 : index
    %c0_57 = arith.constant 0 : index
    %86 = vector.load %arg2[%c0_54, %c6_55, %c0_56, %c0_57] : memref<1x8x16x128xf32, #tpu.memory_space<vmem>>, vector<1x1x16x128xf32>
    %87 = vector.shape_cast %86 : vector<1x1x16x128xf32> to vector<16x128xf32>
    %88 = arith.subf %87, %28 : vector<16x128xf32>
    %89 = math.exp %88 : vector<16x128xf32>
    %90 = arith.addf %81, %89 : vector<16x128xf32>
    %c6_i32 = arith.constant 6 : i32
    %91 = vector.broadcast %c6_i32 : i32 to vector<16x128xi32>
    %92 = arith.cmpi eq, %5, %91 : vector<16x128xi32>
    %93 = arith.select %92, %88, %84 : vector<16x128xi1>, vector<16x128xf32>
    %94 = arith.select %92, %89, %85 : vector<16x128xi1>, vector<16x128xf32>
    %c0_58 = arith.constant 0 : index
    %c7_59 = arith.constant 7 : index
    %c0_60 = arith.constant 0 : index
    %c0_61 = arith.constant 0 : index
    %95 = vector.load %arg2[%c0_58, %c7_59, %c0_60, %c0_61] : memref<1x8x16x128xf32, #tpu.memory_space<vmem>>, vector<1x1x16x128xf32>
    %96 = vector.shape_cast %95 : vector<1x1x16x128xf32> to vector<16x128xf32>
    %97 = arith.subf %96, %28 : vector<16x128xf32>
    %98 = math.exp %97 : vector<16x128xf32>
    %99 = arith.addf %90, %98 : vector<16x128xf32>
    %c7_i32 = arith.constant 7 : i32
    %100 = vector.broadcast %c7_i32 : i32 to vector<16x128xi32>
    %101 = arith.cmpi eq, %5, %100 : vector<16x128xi32>
    %102 = arith.select %101, %97, %93 : vector<16x128xi1>, vector<16x128xf32>
    %103 = arith.select %101, %98, %94 : vector<16x128xi1>, vector<16x128xf32>
    %104 = math.log %99 : vector<16x128xf32>
    %105 = arith.subf %104, %102 : vector<16x128xf32>
    %106 = arith.divf %103, %99 : vector<16x128xf32>
    %cst_62 = arith.constant 0.000000e+00 : f32
    %107 = vector.broadcast %cst_62 : f32 to vector<16x128xf32>
    %108 = arith.select %3, %105, %107 : vector<16x128xi1>, vector<16x128xf32>
    %c0_63 = arith.constant 0 : index
    %c0_64 = arith.constant 0 : index
    %c0_65 = arith.constant 0 : index
    %109 = vector.load %arg4[%c0_63, %c0_64, %c0_65] : memref<1x16x128xf32, #tpu.memory_space<vmem>>, vector<1x16x128xf32>
    %110 = vector.shape_cast %109 : vector<1x16x128xf32> to vector<16x128xf32>
    %111 = vector.shape_cast %108 : vector<16x128xf32> to vector<1x16x128xf32>
    tpu.vector_store %arg4[%c0_63, %c0_64, %c0_65], %111 {strides = array<i32>} : memref<1x16x128xf32, #tpu.memory_space<vmem>>, vector<1x16x128xf32>,
    %cst_66 = arith.constant 2.000000e+00 : f32
    %112 = vector.broadcast %cst_66 : f32 to vector<16x128xf32>
    %113 = arith.select %3, %106, %112 : vector<16x128xi1>, vector<16x128xf32>
    %c0_67 = arith.constant 0 : index
    %c0_68 = arith.constant 0 : index
    %c0_69 = arith.constant 0 : index
    %114 = vector.load %arg5[%c0_67, %c0_68, %c0_69] : memref<1x16x128xf32, #tpu.memory_space<vmem>>, vector<1x16x128xf32>
    %115 = vector.shape_cast %114 : vector<1x16x128xf32> to vector<16x128xf32>
    %116 = vector.shape_cast %113 : vector<16x128xf32> to vector<1x16x128xf32>
    tpu.vector_store %arg5[%c0_67, %c0_68, %c0_69], %116 {strides = array<i32>} : memref<1x16x128xf32, #tpu.memory_space<vmem>>, vector<1x16x128xf32>,
    return
  }
  func.func @transform_0(%arg0: i32, %arg1: i32) -> (i32, i32, i32, i32) {
    %c0_i32 = arith.constant 0 : i32
    %c0_i32_0 = arith.constant 0 : i32
    %c0_i32_1 = arith.constant 0 : i32
    return %arg0, %c0_i32, %arg1, %c0_i32_0 : i32, i32, i32, i32
  }
  func.func @transform_1(%arg0: i32, %arg1: i32) -> (i32, i32, i32) {
    %c0_i32 = arith.constant 0 : i32
    %c0_i32_0 = arith.constant 0 : i32
    return %arg0, %arg1, %c0_i32 : i32, i32, i32
  }
  func.func @transform_2(%arg0: i32, %arg1: i32) -> (i32, i32, i32) {
    %c0_i32 = arith.constant 0 : i32
    %c0_i32_0 = arith.constant 0 : i32
    return %arg0, %arg1, %c0_i32 : i32, i32, i32
  }
  func.func @transform_3(%arg0: i32, %arg1: i32) -> (i32, i32, i32) {
    %c0_i32 = arith.constant 0 : i32
    %c0_i32_0 = arith.constant 0 : i32
    return %arg0, %arg1, %c0_i32 : i32, i32, i32
  }
}

</mosaic_0001>

<llo_original>
// kernel: tpu_custom_call.1
$region0: #{tpu_custom_call.1}
  #allocation0 [shape = 'u32[]', space=smem, size = 0x4, offset = 0x4, fixed_abs, tag = 'smem constant byte address 0x4 - core index']
  #allocation1 [shape = 'u32[144,128]{1,0:T(1,128)}', space=vmem, size = 0x12000, scoped, tag = 'internal scratch']
  %s0 = inlined_call_operand.hbm [shape: f32[2,8,16,128], index: 0, kind: input, shape index: {}]
  %s1 = inlined_call_operand.hbm [shape: s32[2,16,128], index: 1, kind: input, shape index: {}]
  %s2 = inlined_call_operand.hbm [shape: f32[2,16,128], index: 2, kind: output, shape index: {0}]
  %s3 = inlined_call_operand.hbm [shape: f32[2,16,128], index: 3, kind: output, shape index: {1}]
  %4 = xla_tuple %s2, %s3
  %s5 = sld [smem:[#allocation0]]
  $region57: #{tpu_custom_call.1} parent=0
    _
  %s7 = ssub.s32 1, %s5
  %s8 = scalar_select 0, %s7, %s5
  $region1: #{tpu_custom_call.1} parent=0
    #allocation2 [shape = 'u8[131072]{0}', space=vmem, size = 0x20000, scoped, tag = 'input window, operand 0']
    #allocation3 [shape = 's32[2]{0}', space=sflag, size = 0x8, scoped, tag = 'scoped memory for tpu_custom_call.1']
    #allocation4 [shape = 's32[2]{0}', space=sflag, size = 0x8, scoped, tag = 'scoped memory for tpu_custom_call.1']
    #allocation5 [shape = 'u8[16384]{0}', space=vmem, size = 0x4000, scoped, tag = 'input window, operand 1']
    #allocation6 [shape = 's32[2]{0}', space=sflag, size = 0x8, scoped, tag = 'scoped memory for tpu_custom_call.1']
    #allocation7 [shape = 'u8[16384]{0}', space=vmem, size = 0x4000, scoped, tag = 'output window, operand 0']
    #allocation8 [shape = 'u8[16384]{0}', space=vmem, size = 0x4000, scoped, tag = 'output window, operand 1']
    #allocation9 [shape = 's32[2]{0}', space=sflag, size = 0x8, scoped, tag = 'scoped memory for tpu_custom_call.1']
    %9 = vsyncpa [#allocation3], 0
    %s10 = scalar_lea.sflag [#allocation3], 1
    %11 = vsyncpa %s10, 0
    %12 = vsyncpa [#allocation6], 0
    %s13 = scalar_lea.sflag [#allocation6], 1
    %14 = vsyncpa %s13, 0
    %15 = vsyncpa [#allocation4], 0
    %s16 = scalar_lea.sflag [#allocation4], 1
    %17 = vsyncpa %s16, 0
    %18 = vsyncpa [#allocation9], 0
    %s19 = scalar_lea.sflag [#allocation9], 1
    %20 = vsyncpa %s19, 0
    loop: start=0, step=1, limit=4
    $region2: #{tpu_custom_call.1} parent=1 // loop_pre_header
      _
    $region3: #{tpu_custom_call.1} parent=1 // loop_header
      %s22 = sphi 0, %s26
      %p23 = scmp.ge.s32.totalorder %s22, 4
      %s29 = sphi 0, %s41
      %s30 = sphi 0, %s37
      %s31 = sphi 0, %s29
      %s32 = sphi 0, %s30
      %s33 = sphi 0, %s31
      %s34 = sphi 0, %s32
      %s46 = sphi 0, %s48
      %s49 = sphi 0, %s46
      %s50 = sphi 0, %s49
      %s66 = sphi 0, %s50
      %s74 = sphi 0, %s76
      %s77 = sphi 0, %s74
      %s78 = sphi 0, %s77
      %s94 = sphi 0, %s78
      %s102 = sphi 0, %s104
      %s105 = sphi 0, %s102
      %s106 = sphi 0, %s105
      %s122 = sphi 0, %s106
      %s130 = sphi 0, %s132
      %s133 = sphi 0, %s130
      %s134 = sphi 0, %s133
      %s150 = sphi 0, %s134
    $region4: #{tpu_custom_call.1} parent=1 // loop_header_branch
      %25 = sbr.rel (%p23) target = $region8
    $region5: #{tpu_custom_call.1} parent=1 // loop_body
      %s27 = ssub.s32 %s22, 1
      %s28 = ssub.s32 %s22, 2
      %s35 = sadd.s32 1, %s30
      %p36 = scmp.ge.s32.totalorder %s35, 1
      %s37 = scalar_select %p36, 0, %s35
      %s38 = sadd.s32 1, %s29
      %s39 = scalar_select %p36, %s38, %s29
      %p40 = scmp.ge.s32.totalorder %s39, 2
      %s41 = scalar_select %p40, 0, %s39
      %s42 = ssub.s32 %s29, %s41
      %s43 = ssub.s32 %s30, %s37
      %s44 = sor.u32 %s42, %s43
      %p45 = scmp.eq.s32.totalorder %s44, 0
      %s47 = sadd.s32 %s46, 1
      %s48 = scalar_select %p45, %s46, %s47
      %p51 = pneg %p45
      %p52 = scmp.eq.s32.totalorder %s22, 1
      %p53 = por %p51, %p52
      %p54 = scmp.ne.s32.totalorder %s46, %s49
      %p55 = scmp.eq.s32.totalorder %s22, 0
      %p56 = por %p54, %p55
      %p57 = scmp.ne.s32.totalorder %s46, %s49
      %p58 = scmp.eq.s32.totalorder %s27, 1
      %p59 = por %p57, %p58
      %p60 = scmp.ne.s32.totalorder %s49, %s50
      %p61 = scmp.eq.s32.totalorder %s27, 0
      %p62 = por %p60, %p61
      %p63 = scmp.ne.s32.totalorder %s49, %s50
      %p64 = scmp.eq.s32.totalorder %s28, 1
      %p65 = por %p63, %p64
      %p67 = scmp.ne.s32.totalorder %s50, %s66
      %p68 = scmp.eq.s32.totalorder %s28, 0
      %p69 = por %p67, %p68
      %s70 = ssub.s32 %s29, %s41
      %s71 = ssub.s32 %s30, %s37
      %s72 = sor.u32 %s70, %s71
      %p73 = scmp.eq.s32.totalorder %s72, 0
      %s75 = sadd.s32 %s74, 1
      %s76 = scalar_select %p73, %s74, %s75
      %p79 = pneg %p73
      %p80 = scmp.eq.s32.totalorder %s22, 1
      %p81 = por %p79, %p80
      %p82 = scmp.ne.s32.totalorder %s74, %s77
      %p83 = scmp.eq.s32.totalorder %s22, 0
      %p84 = por %p82, %p83
      %p85 = scmp.ne.s32.totalorder %s74, %s77
      %p86 = scmp.eq.s32.totalorder %s27, 1
      %p87 = por %p85, %p86
      %p88 = scmp.ne.s32.totalorder %s77, %s78
      %p89 = scmp.eq.s32.totalorder %s27, 0
      %p90 = por %p88, %p89
      %p91 = scmp.ne.s32.totalorder %s77, %s78
      %p92 = scmp.eq.s32.totalorder %s28, 1
      %p93 = por %p91, %p92
      %p95 = scmp.ne.s32.totalorder %s78, %s94
      %p96 = scmp.eq.s32.totalorder %s28, 0
      %p97 = por %p95, %p96
      %s98 = ssub.s32 %s29, %s41
      %s99 = ssub.s32 %s30, %s37
      %s100 = sor.u32 %s98, %s99
      %p101 = scmp.eq.s32.totalorder %s100, 0
      %s103 = sadd.s32 %s102, 1
      %s104 = scalar_select %p101, %s102, %s103
      %p107 = pneg %p101
      %p108 = scmp.eq.s32.totalorder %s22, 1
      %p109 = por %p107, %p108
      %p110 = scmp.ne.s32.totalorder %s102, %s105
      %p111 = scmp.eq.s32.totalorder %s22, 0
      %p112 = por %p110, %p111
      %p113 = scmp.ne.s32.totalorder %s102, %s105
      %p114 = scmp.eq.s32.totalorder %s27, 1
      %p115 = por %p113, %p114
      %p116 = scmp.ne.s32.totalorder %s105, %s106
      %p117 = scmp.eq.s32.totalorder %s27, 0
      %p118 = por %p116, %p117
      %p119 = scmp.ne.s32.totalorder %s105, %s106
      %p120 = scmp.eq.s32.totalorder %s28, 1
      %p121 = por %p119, %p120
      %p123 = scmp.ne.s32.totalorder %s106, %s122
      %p124 = scmp.eq.s32.totalorder %s28, 0
      %p125 = por %p123, %p124
      %s126 = ssub.s32 %s29, %s41
      %s127 = ssub.s32 %s30, %s37
      %s128 = sor.u32 %s126, %s127
      %p129 = scmp.eq.s32.totalorder %s128, 0
      %s131 = sadd.s32 %s130, 1
      %s132 = scalar_select %p129, %s130, %s131
      %p135 = pneg %p129
      %p136 = scmp.eq.s32.totalorder %s22, 1
      %p137 = por %p135, %p136
      %p138 = scmp.ne.s32.totalorder %s130, %s133
      %p139 = scmp.eq.s32.totalorder %s22, 0
      %p140 = por %p138, %p139
      %p141 = scmp.ne.s32.totalorder %s130, %s133
      %p142 = scmp.eq.s32.totalorder %s27, 1
      %p143 = por %p141, %p142
      %p144 = scmp.ne.s32.totalorder %s133, %s134
      %p145 = scmp.eq.s32.totalorder %s27, 0
      %p146 = por %p144, %p145
      %p147 = scmp.ne.s32.totalorder %s133, %s134
      %p148 = scmp.eq.s32.totalorder %s28, 1
      %p149 = por %p147, %p148
      %p151 = scmp.ne.s32.totalorder %s134, %s150
      %p152 = scmp.eq.s32.totalorder %s28, 0
      %p153 = por %p151, %p152
      %p154 = scmp.le.s32.totalorder 1, %s22
      %p155 = scmp.lt.s32.totalorder %s22, 3
      %p156 = pnand %p154, %p155
      %p157 = pneg %p156
      // Predicated region
      $region9: #{tpu_custom_call.1} parent=5 // pred_check
        _
      $region10: #{tpu_custom_call.1} parent=5 // pred_check_branch
        %159 = sbr.rel (%p156) target = $region12
      $region11: #{tpu_custom_call.1} parent=5 // pred_region
        %s160 = ssub.s32 %s22, 1
      $region12: #{tpu_custom_call.1} parent=5 // pred_fallthru
        _
      %p161 = scmp.lt.s32.totalorder %s22, 2
      // Predicated region
      $region13: #{tpu_custom_call.1} parent=5 // pred_check
        %p162 = pneg %p161
      $region14: #{tpu_custom_call.1} parent=5 // pred_check_branch
        %164 = sbr.rel (%p162) target = $region16
      $region15: #{tpu_custom_call.1} parent=5 // pred_region
        // Predicated region
        $region17: #{tpu_custom_call.1} parent=15 // pred_check
          %p165 = pneg %p56
        $region18: #{tpu_custom_call.1} parent=15 // pred_check_branch
          %167 = sbr.rel (%p165) target = $region20
        $region19: #{tpu_custom_call.1} parent=15 // pred_region
          %s168 = sand.u32 %s46, 1
          %s169 = scalar_lea.sflag [#allocation3], %s168
          %s170 = sand.u32 %s46, 1
          %s171 = smul.addr %s170, 128
          %s172 = scalar_lea.vmem [#allocation2], %s171
          %s173 = smul.u32 2, %s30
          %s175 = ssub.s32 2048, 2048
          %176 = vsyncadd %s169, %s175
          %s177 = smul.addr %s29, 16
          %s178 = sadd.s32 %s173, %s177
          %s179 = smul.addr %s178, 128
          %s180 = scalar_lea.hbm %s0, %s179
          %s181 = sshll.u32 %s172, 4
          %s182 = int_to_ptr.vmem [resolvable:$true] %s181
          %187 = dma.hbm_to_vmem [thread:$0]  %s180, 2048, %s182, %s169, 128, 128, 8
        $region20: #{tpu_custom_call.1} parent=15 // pred_fallthru
          _
        // Predicated region
        $region21: #{tpu_custom_call.1} parent=15 // pred_check
          %p188 = pneg %p84
        $region22: #{tpu_custom_call.1} parent=15 // pred_check_branch
          %190 = sbr.rel (%p188) target = $region24
        $region23: #{tpu_custom_call.1} parent=15 // pred_region
          %s191 = sand.u32 %s74, 1
          %s192 = scalar_lea.sflag [#allocation6], %s191
          %s193 = sand.u32 %s74, 1
          %s194 = smul.addr %s193, 16
          %s195 = scalar_lea.vmem [#allocation5], %s194
          %s196 = smul.u32 2, %s30
          %s198 = ssub.s32 256, 256
          %199 = vsyncadd %s192, %s198
          %s200 = smul.addr %s29, 2
          %s201 = sadd.s32 %s196, %s200
          %s202 = smul.addr %s201, 128
          %s203 = scalar_lea.hbm %s1, %s202
          %s204 = sshll.u32 %s195, 4
          %s205 = int_to_ptr.vmem [resolvable:$true] %s204
          %210 = dma.hbm_to_vmem [thread:$0]  %s203, 256, %s205, %s192, 128, 128, 8
        $region24: #{tpu_custom_call.1} parent=15 // pred_fallthru
          _
      $region16: #{tpu_custom_call.1} parent=5 // pred_fallthru
        _
      %p211 = scmp.le.s32.totalorder 1, %s22
      %p212 = scmp.lt.s32.totalorder %s22, 3
      %p213 = pnand %p211, %p212
      %p214 = pneg %p213
      // Predicated region
      $region25: #{tpu_custom_call.1} parent=5 // pred_check
        _
      $region26: #{tpu_custom_call.1} parent=5 // pred_check_branch
        %216 = sbr.rel (%p213) target = $region28
      $region27: #{tpu_custom_call.1} parent=5 // pred_region
        %s217 = ssub.s32 %s22, 1
        %s218 = sand.u32 %s49, 1
        %s219 = scalar_lea.sflag [#allocation3], %s218
        %s220 = sand.u32 %s49, 1
        %s221 = smul.addr %s220, 128
        %s222 = scalar_lea.vmem [#allocation2], %s221
        // Predicated region
        $region29: #{tpu_custom_call.1} parent=27 // pred_check
          %p223 = pneg %p62
        $region30: #{tpu_custom_call.1} parent=27 // pred_check_branch
          %225 = sbr.rel (%p223) target = $region32
        $region31: #{tpu_custom_call.1} parent=27 // pred_region
          %226 = dma.done %s219, 2048
        $region32: #{tpu_custom_call.1} parent=27 // pred_fallthru
          _
        %s227 = sand.u32 %s77, 1
        %s228 = scalar_lea.sflag [#allocation6], %s227
        %s229 = sand.u32 %s77, 1
        %s230 = smul.addr %s229, 16
        %s231 = scalar_lea.vmem [#allocation5], %s230
        // Predicated region
        $region33: #{tpu_custom_call.1} parent=27 // pred_check
          %p232 = pneg %p90
        $region34: #{tpu_custom_call.1} parent=27 // pred_check_branch
          %234 = sbr.rel (%p232) target = $region36
        $region35: #{tpu_custom_call.1} parent=27 // pred_region
          %235 = dma.done %s228, 256
        $region36: #{tpu_custom_call.1} parent=27 // pred_fallthru
          _
        %s236 = sand.u32 %s49, 1
        %s237 = scalar_lea.sflag [#allocation3], %s236
        %s238 = sand.u32 %s49, 1
        %s239 = smul.addr %s238, 128
        %s240 = scalar_lea.vmem [#allocation2], %s239
        %p241 = pneg %p62
        %p242 = pneg %p59
        %s243 = sand.u32 %s77, 1
        %s244 = scalar_lea.sflag [#allocation6], %s243
        %s245 = sand.u32 %s77, 1
        %s246 = smul.addr %s245, 16
        %s247 = scalar_lea.vmem [#allocation5], %s246
        %p248 = pneg %p90
        %p249 = pneg %p87
        %p250 = pneg %p118
        %p251 = pneg %p115
        %s252 = sand.u32 %s105, 1
        %s253 = scalar_lea.sflag [#allocation4], %s252
        %s254 = sand.u32 %s105, 1
        %s255 = smul.addr %s254, 16
        %s256 = scalar_lea.vmem [#allocation7], %s255
        %p257 = pneg %p146
        %p258 = pneg %p143
        %s259 = sand.u32 %s133, 1
        %s260 = scalar_lea.sflag [#allocation9], %s259
        %s261 = sand.u32 %s133, 1
        %s262 = smul.addr %s261, 16
        %s263 = scalar_lea.vmem [#allocation8], %s262
        %s264 = smul.u32 2, %s32
        %s265 = smul.u32 2, %s32
        %s266 = smul.u32 2, %s32
        %s267 = smul.u32 2, %s32
        %v268 = vld [vmem:[%s231] sm:$0xff]
        %v269 = vld [vmem:[%s231 + $0x8] sm:$0xff]
        %vm270 = vcmp.ne.s32.totalorder %v268, 255
        %vm271 = vcmp.ne.s32.totalorder %v269, 255
        %v272 = vsel %vm270, %v268, 0
        %v273 = vsel %vm271, %v269, 0
        %v274 = vld [vmem:[%s222] sm:$0xff]
        %v275 = vld [vmem:[%s222 + $0x8] sm:$0xff]
        %s276 = scalar_lea.vmem %s222, 16 [#allocation2]
        %v277 = vld [vmem:[%s276] sm:$0xff]
        %v278 = vld [vmem:[%s276 + $0x8] sm:$0xff]
        %v279 = vmax.f32 %v274, %v277
        %v280 = vmax.f32 %v275, %v278
        %s281 = scalar_lea.vmem %s222, 32 [#allocation2]
        %v282 = vld [vmem:[%s281] sm:$0xff]
        %v283 = vld [vmem:[%s281 + $0x8] sm:$0xff]
        %v284 = vmax.f32 %v279, %v282
        %v285 = vmax.f32 %v280, %v283
        %s286 = scalar_lea.vmem %s222, 48 [#allocation2]
        %v287 = vld [vmem:[%s286] sm:$0xff]
        %v288 = vld [vmem:[%s286 + $0x8] sm:$0xff]
        %v289 = vmax.f32 %v284, %v287
        %v290 = vmax.f32 %v285, %v288
        %s291 = scalar_lea.vmem %s222, 64 [#allocation2]
        %v292 = vld [vmem:[%s291] sm:$0xff]
        %v293 = vld [vmem:[%s291 + $0x8] sm:$0xff]
        %v294 = vmax.f32 %v289, %v292
        %v295 = vmax.f32 %v290, %v293
        %s296 = scalar_lea.vmem %s222, 80 [#allocation2]
        %v297 = vld [vmem:[%s296] sm:$0xff]
        %v298 = vld [vmem:[%s296 + $0x8] sm:$0xff]
        %v299 = vmax.f32 %v294, %v297
        %v300 = vmax.f32 %v295, %v298
        %s301 = scalar_lea.vmem %s222, 96 [#allocation2]
        %v302 = vld [vmem:[%s301] sm:$0xff]
        %v303 = vld [vmem:[%s301 + $0x8] sm:$0xff]
        %v304 = vmax.f32 %v299, %v302
        %v305 = vmax.f32 %v300, %v303
        %s306 = scalar_lea.vmem %s222, 112 [#allocation2]
        %v307 = vld [vmem:[%s306] sm:$0xff]
        %v308 = vld [vmem:[%s306 + $0x8] sm:$0xff]
        %v309 = vmax.f32 %v304, %v307
        %v310 = vmax.f32 %v305, %v308
        %v311 = vsub.f32 %v274, %v309
        %v312 = vsub.f32 %v275, %v310
        %v313 = vmul.f32 %v311, 1.442695
        %v314 = vpow.pop %v313
        %v315 = vmul.f32 %v312, 1.442695
        %v316 = vpow.pop %v315
        %v317 = vadd.f32 %v314, 0.0
        %v318 = vadd.f32 %v316, 0.0
        %vm319 = vcmp.eq.s32.totalorder %v272, 0
        %vm320 = vcmp.eq.s32.totalorder %v273, 0
        %v321 = vsel %vm319, %v311, 0.0
        %v322 = vsel %vm320, %v312, 0.0
        %v323 = vsel %vm319, %v314, 0.0
        %v324 = vsel %vm320, %v316, 0.0
        %v325 = vsub.f32 %v277, %v309
        %v326 = vsub.f32 %v278, %v310
        %v327 = vmul.f32 %v325, 1.442695
        %v328 = vpow.pop %v327
        %v329 = vmul.f32 %v326, 1.442695
        %v330 = vpow.pop %v329
        %v331 = vadd.f32 %v317, %v328
        %v332 = vadd.f32 %v318, %v330
        %vm333 = vcmp.eq.s32.totalorder %v272, 1
        %vm334 = vcmp.eq.s32.totalorder %v273, 1
        %v335 = vsel %vm333, %v325, %v321
        %v336 = vsel %vm334, %v326, %v322
        %v337 = vsel %vm333, %v328, %v323
        %v338 = vsel %vm334, %v330, %v324
        %v339 = vsub.f32 %v282, %v309
        %v340 = vsub.f32 %v283, %v310
        %v341 = vmul.f32 %v339, 1.442695
        %v342 = vpow.pop %v341
        %v343 = vmul.f32 %v340, 1.442695
        %v344 = vpow.pop %v343
        %v345 = vadd.f32 %v331, %v342
        %v346 = vadd.f32 %v332, %v344
        %vm347 = vcmp.eq.s32.totalorder %v272, 2
        %vm348 = vcmp.eq.s32.totalorder %v273, 2
        %v349 = vsel %vm347, %v339, %v335
        %v350 = vsel %vm348, %v340, %v336
        %v351 = vsel %vm347, %v342, %v337
        %v352 = vsel %vm348, %v344, %v338
        %v353 = vsub.f32 %v287, %v309
        %v354 = vsub.f32 %v288, %v310
        %v355 = vmul.f32 %v353, 1.442695
        %v356 = vpow.pop %v355
        %v357 = vmul.f32 %v354, 1.442695
        %v358 = vpow.pop %v357
        %v359 = vadd.f32 %v345, %v356
        %v360 = vadd.f32 %v346, %v358
        %vm361 = vcmp.eq.s32.totalorder %v272, 3
        %vm362 = vcmp.eq.s32.totalorder %v273, 3
        %v363 = vsel %vm361, %v353, %v349
        %v364 = vsel %vm362, %v354, %v350
        %v365 = vsel %vm361, %v356, %v351
        %v366 = vsel %vm362, %v358, %v352
        %v367 = vsub.f32 %v292, %v309
        %v368 = vsub.f32 %v293, %v310
        %v369 = vmul.f32 %v367, 1.442695
        %v370 = vpow.pop %v369
        %v371 = vmul.f32 %v368, 1.442695
        %v372 = vpow.pop %v371
        %v373 = vadd.f32 %v359, %v370
        %v374 = vadd.f32 %v360, %v372
        %vm375 = vcmp.eq.s32.totalorder %v272, 4
        %vm376 = vcmp.eq.s32.totalorder %v273, 4
        %v377 = vsel %vm375, %v367, %v363
        %v378 = vsel %vm376, %v368, %v364
        %v379 = vsel %vm375, %v370, %v365
        %v380 = vsel %vm376, %v372, %v366
        %v381 = vsub.f32 %v297, %v309
        %v382 = vsub.f32 %v298, %v310
        %v383 = vmul.f32 %v381, 1.442695
        %v384 = vpow.pop %v383
        %v385 = vmul.f32 %v382, 1.442695
        %v386 = vpow.pop %v385
        %v387 = vadd.f32 %v373, %v384
        %v388 = vadd.f32 %v374, %v386
        %vm389 = vcmp.eq.s32.totalorder %v272, 5
        %vm390 = vcmp.eq.s32.totalorder %v273, 5
        %v391 = vsel %vm389, %v381, %v377
        %v392 = vsel %vm390, %v382, %v378
        %v393 = vsel %vm389, %v384, %v379
        %v394 = vsel %vm390, %v386, %v380
        %v395 = vsub.f32 %v302, %v309
        %v396 = vsub.f32 %v303, %v310
        %v397 = vmul.f32 %v395, 1.442695
        %v398 = vpow.pop %v397
        %v399 = vmul.f32 %v396, 1.442695
        %v400 = vpow.pop %v399
        %v401 = vadd.f32 %v387, %v398
        %v402 = vadd.f32 %v388, %v400
        %vm403 = vcmp.eq.s32.totalorder %v272, 6
        %vm404 = vcmp.eq.s32.totalorder %v273, 6
        %v405 = vsel %vm403, %v395, %v391
        %v406 = vsel %vm404, %v396, %v392
        %v407 = vsel %vm403, %v398, %v393
        %v408 = vsel %vm404, %v400, %v394
        %v409 = vsub.f32 %v307, %v309
        %v410 = vsub.f32 %v308, %v310
        %v411 = vmul.f32 %v409, 1.442695
        %v412 = vpow.pop %v411
        %v413 = vmul.f32 %v410, 1.442695
        %v414 = vpow.pop %v413
        %v415 = vadd.f32 %v401, %v412
        %v416 = vadd.f32 %v402, %v414
        %vm417 = vcmp.eq.s32.totalorder %v272, 7
        %vm418 = vcmp.eq.s32.totalorder %v273, 7
        %v419 = vsel %vm417, %v409, %v405
        %v420 = vsel %vm418, %v410, %v406
        %v421 = vsel %vm417, %v412, %v407
        %v422 = vsel %vm418, %v414, %v408
        %v423 = vlog2.pop %v415
        %v424 = vmul.f32 %v423, 0.6931472
        %v425 = vlog2.pop %v416
        %v426 = vmul.f32 %v425, 0.6931472
        %v427 = vsub.f32 %v424, %v419
        %v428 = vsub.f32 %v426, %v420
        %v429 = vrcp.pop %v415
        %v430 = vmul.f32 %v421, %v429
        %v431 = vrcp.pop %v416
        %v432 = vmul.f32 %v422, %v431
        %v433 = vsel %vm270, %v427, 0.0
        %v434 = vsel %vm271, %v428, 0.0
        %435 = vst [vmem:[%s256] sm:$0xff] %v433
        %436 = vst [vmem:[%s256 + $0x8] sm:$0xff] %v434
        %v437 = vsel %vm270, %v430, 2.0
        %v438 = vsel %vm271, %v432, 2.0
        %439 = vst [vmem:[%s263] sm:$0xff] %v437
        %440 = vst [vmem:[%s263 + $0x8] sm:$0xff] %v438
        %s441 = sand.u32 %s105, 1
        %s442 = scalar_lea.sflag [#allocation4], %s441
        %s443 = sand.u32 %s105, 1
        %s444 = smul.addr %s443, 16
        %s445 = scalar_lea.vmem [#allocation7], %s444
        %s446 = sand.u32 %s133, 1
        %s447 = scalar_lea.sflag [#allocation9], %s446
        %s448 = sand.u32 %s133, 1
        %s449 = smul.addr %s448, 16
        %s450 = scalar_lea.vmem [#allocation8], %s449
        // Predicated region
        $region37: #{tpu_custom_call.1} parent=27 // pred_check
          %p451 = pneg %p115
        $region38: #{tpu_custom_call.1} parent=27 // pred_check_branch
          %453 = sbr.rel (%p451) target = $region40
        $region39: #{tpu_custom_call.1} parent=27 // pred_region
          %s454 = smul.u32 2, %s32
          %s456 = ssub.s32 256, 256
          %457 = vsyncadd %s442, %s456
          %s458 = smul.addr %s31, 2
          %s459 = sadd.s32 %s454, %s458
          %s460 = smul.addr %s459, 128
          %s461 = scalar_lea.hbm %s2, %s460
          %s462 = sshll.u32 %s445, 4
          %s463 = int_to_ptr.vmem [resolvable:$true] %s462
          %468 = dma.vmem_to_hbm [thread:$0]  %s463, 256, %s461, %s442, 128, 128, 8
        $region40: #{tpu_custom_call.1} parent=27 // pred_fallthru
          _
        // Predicated region
        $region41: #{tpu_custom_call.1} parent=27 // pred_check
          %p469 = pneg %p143
        $region42: #{tpu_custom_call.1} parent=27 // pred_check_branch
          %471 = sbr.rel (%p469) target = $region44
        $region43: #{tpu_custom_call.1} parent=27 // pred_region
          %s472 = smul.u32 2, %s32
          %s474 = ssub.s32 256, 256
          %475 = vsyncadd %s447, %s474
          %s476 = smul.addr %s31, 2
          %s477 = sadd.s32 %s472, %s476
          %s478 = smul.addr %s477, 128
          %s479 = scalar_lea.hbm %s3, %s478
          %s480 = sshll.u32 %s450, 4
          %s481 = int_to_ptr.vmem [resolvable:$true] %s480
          %486 = dma.vmem_to_hbm [thread:$0]  %s481, 256, %s479, %s447, 128, 128, 8
        $region44: #{tpu_custom_call.1} parent=27 // pred_fallthru
          _
      $region28: #{tpu_custom_call.1} parent=5 // pred_fallthru
        _
      %p487 = scmp.le.s32.totalorder 2, %s22
      // Predicated region
      $region45: #{tpu_custom_call.1} parent=5 // pred_check
        %p488 = pneg %p487
      $region46: #{tpu_custom_call.1} parent=5 // pred_check_branch
        %490 = sbr.rel (%p488) target = $region48
      $region47: #{tpu_custom_call.1} parent=5 // pred_region
        %s491 = ssub.s32 %s22, 2
        // Predicated region
        $region49: #{tpu_custom_call.1} parent=47 // pred_check
          %p492 = pneg %p121
        $region50: #{tpu_custom_call.1} parent=47 // pred_check_branch
          %494 = sbr.rel (%p492) target = $region52
        $region51: #{tpu_custom_call.1} parent=47 // pred_region
          %s495 = sand.u32 %s106, 1
          %s496 = scalar_lea.sflag [#allocation4], %s495
          %s497 = sand.u32 %s106, 1
          %s498 = smul.addr %s497, 16
          %s499 = scalar_lea.vmem [#allocation7], %s498
          %500 = dma.done %s496, 256
        $region52: #{tpu_custom_call.1} parent=47 // pred_fallthru
          _
        // Predicated region
        $region53: #{tpu_custom_call.1} parent=47 // pred_check
          %p501 = pneg %p149
        $region54: #{tpu_custom_call.1} parent=47 // pred_check_branch
          %503 = sbr.rel (%p501) target = $region56
        $region55: #{tpu_custom_call.1} parent=47 // pred_region
          %s504 = sand.u32 %s134, 1
          %s505 = scalar_lea.sflag [#allocation9], %s504
          %s506 = sand.u32 %s134, 1
          %s507 = smul.addr %s506, 16
          %s508 = scalar_lea.vmem [#allocation8], %s507
          %509 = dma.done %s505, 256
        $region56: #{tpu_custom_call.1} parent=47 // pred_fallthru
          _
      $region48: #{tpu_custom_call.1} parent=5 // pred_fallthru
        _
    $region6: #{tpu_custom_call.1} parent=1 // loop_footer
      %s26 = sadd.s32 1, %s22
    $region7: #{tpu_custom_call.1} parent=1 // loop_footer_branch
      %21 = sbr.rel target = $region3
    $region8: #{tpu_custom_call.1} parent=1 // loop_exit
      _
    %510 = vsyncpa [#allocation3], 1
    %s511 = scalar_lea.sflag [#allocation3], 1
    %512 = vsyncpa %s511, 1
    %513 = vsyncpa [#allocation6], 1
    %s514 = scalar_lea.sflag [#allocation6], 1
    %515 = vsyncpa %s514, 1
    %516 = vsyncpa [#allocation4], 1
    %s517 = scalar_lea.sflag [#allocation4], 1
    %518 = vsyncpa %s517, 1
    %519 = vsyncpa [#allocation9], 1
    %s520 = scalar_lea.sflag [#allocation9], 1
    %521 = vsyncpa %s520, 1

</llo_original>
